<compile_context>
chip_gen: v5e
topology: v5e:2x2
jax: 0.10.0
libtpu: 0.0.40
codegen_flags: <defaults>
</compile_context>

<pallas_src>
import functools
import math

import jax
import jax.numpy as jnp
from jax.experimental import pallas as pl
from jax.experimental.pallas import tpu as pltpu

F32 = jnp.float32
_EPS = 1e-5


# ----------------------------------------------------------------------------
# Fused Pallas kernel: im2col matmul + bias + training-mode BatchNorm2d
# ----------------------------------------------------------------------------
def _conv_bn_kernel(cols_ref, w_ref, b_ref, g_ref, beta_ref, o_ref, *, eps):
    # cols: (Cin*P, N)  -- im2col columns, N = B*lead*L_out on the lane axis
    # w:    (Co, Cin*P) -- conv weight reshaped
    # b/g/beta: (Co, 1) -- conv bias, BN gamma, BN beta
    y = jnp.dot(w_ref[...], cols_ref[...],
                preferred_element_type=jnp.float32) + b_ref[...]
    # BatchNorm2d (training mode): per-channel statistics over all (B, H, W)
    # positions, computed from the f32 accumulator while it is still in VMEM.
    mean = jnp.mean(y, axis=1, keepdims=True)
    var = jnp.mean(jnp.square(y - mean), axis=1, keepdims=True)
    o_ref[...] = (y - mean) * jax.lax.rsqrt(var + eps) * g_ref[...] + beta_ref[...]


# ----------------------------------------------------------------------------
# Forward (single jit; all glue is cheap reshapes/slices fused by XLA)
# ----------------------------------------------------------------------------
@functools.partial(jax.jit, static_argnames=("patch_size", "stride"))
def overlap_patch_embed(x, w, b, gamma, beta, *, patch_size, stride):
    """x: (B, Cin, lead, W) NCHW.  Returns (y_nchw, lead, L_out)."""
    B, Cin, H, W = x.shape
    Co = w.shape[0]
    P, S = patch_size, stride
    pad = P // 2
    L = (W + 2 * pad - P) // S + 1
    N = B * H * L

    # im2col along the length axis only (kernel height is 1).
    xp = jnp.pad(x, ((0, 0), (0, 0), (0, 0), (pad, pad)))          # (B,Cin,H,Wp)
    taps = [xp[:, :, :, q:q + S * (L - 1) + 1:S] for q in range(P)]  # each (B,Cin,H,L)
    cols = jnp.stack(taps, axis=2)                                  # (B,Cin,P,H,L)
    cols = cols.transpose(1, 2, 0, 3, 4).reshape(Cin * P, N)        # (Cin*P, N)

    w2 = w.reshape(Co, Cin * P)                                     # OIHW -> (Co, Cin*P)

    out2d = pl.pallas_call(
        functools.partial(_conv_bn_kernel, eps=_EPS),
        out_shape=jax.ShapeDtypeStruct((Co, N), F32),
        in_specs=[pl.BlockSpec(memory_space=pltpu.MemorySpace.VMEM)] * 5,
        out_specs=pl.BlockSpec(memory_space=pltpu.MemorySpace.VMEM),
    )(cols, w2, b.reshape(-1, 1), gamma.reshape(-1, 1), beta.reshape(-1, 1))

    y = out2d.reshape(Co, B, H, L).transpose(1, 0, 2, 3)            # back to NCHW
    return y, H, L


# ----------------------------------------------------------------------------
# Deterministic parameters (shapes / init from the PyTorch __init__)
# ----------------------------------------------------------------------------
def make_params(in_chans, embed_dim, patch_size, seed=0):
    key = jax.random.PRNGKey(seed)
    fan_out = 1 * patch_size * embed_dim
    w = (math.sqrt(2.0 / fan_out)
         * jax.random.normal(key, (embed_dim, in_chans, 1, patch_size))).astype(F32)
    b = jnp.zeros((embed_dim,), F32)
    gamma = jnp.ones((embed_dim,), F32)     # BatchNorm2d default init
    beta = jnp.zeros((embed_dim,), F32)
    return w, b, gamma, beta


if __name__ == "__main__":
    B, CIN, LEAD, WIDTH = 2, 4, 12, 64
    EMBED, P, S = 32, 7, 4

    key = jax.random.PRNGKey(0)
    kx, kp = jax.random.split(key)
    x = jax.random.normal(kx, (B, CIN, LEAD, WIDTH), F32)
    w, b, gamma, beta = make_params(CIN, EMBED, P, seed=1)

    out, lead, L = overlap_patch_embed(x, w, b, gamma, beta,
                                       patch_size=P, stride=S)
    out = jax.block_until_ready(out)

    pad = P // 2
    L_exp = (WIDTH + 2 * pad - P) // S + 1
    assert out.shape == (B, EMBED, LEAD, L_exp), out.shape
    assert int(lead) == LEAD and int(L) == L_exp

    # Pure-JAX reference: conv (1,P) stride (1,S) + bias + training-mode BN.
    ref = jax.lax.conv_general_dilated(
        x, w, window_strides=(1, S), padding=((0, 0), (pad, pad)),
        dimension_numbers=("NCHW", "OIHW", "NCHW")) + b.reshape(1, -1, 1, 1)
    mu = jnp.mean(ref, axis=(0, 2, 3), keepdims=True)
    var = jnp.mean(jnp.square(ref - mu), axis=(0, 2, 3), keepdims=True)
    ref = ((ref - mu) * jax.lax.rsqrt(var + _EPS)
           * gamma.reshape(1, -1, 1, 1) + beta.reshape(1, -1, 1, 1))

    assert bool(jnp.all(jnp.isfinite(out)))
    assert bool(jnp.allclose(out, ref, atol=1e-4, rtol=1e-4)), \
        float(jnp.max(jnp.abs(out - ref)))
    print("KERNEL_OK")
</pallas_src>

<mosaic_0001>
module attributes {stable_mosaic.version = 11 : i64} {
  func.func @_conv_bn_kernel(%arg0: memref<28x384xf32, #tpu.memory_space<vmem>>, %arg1: memref<32x28xf32, #tpu.memory_space<vmem>>, %arg2: memref<32x1xf32, #tpu.memory_space<vmem>>, %arg3: memref<32x1xf32, #tpu.memory_space<vmem>>, %arg4: memref<32x1xf32, #tpu.memory_space<vmem>>, %arg5: memref<32x384xf32, #tpu.memory_space<vmem>>) attributes {dimension_semantics = [], scalar_prefetch = 0 : i64, scratch_operands = 0 : i64, tpu.core_type = #tpu.core_type<tc>} {
    %c0 = arith.constant 0 : index
    %c0_0 = arith.constant 0 : index
    %0 = vector.load %arg1[%c0, %c0_0] : memref<32x28xf32, #tpu.memory_space<vmem>>, vector<32x28xf32>
    %c0_1 = arith.constant 0 : index
    %c0_2 = arith.constant 0 : index
    %1 = vector.load %arg0[%c0_1, %c0_2] : memref<28x384xf32, #tpu.memory_space<vmem>>, vector<28x384xf32>
    %cst = arith.constant dense<0.000000e+00> : vector<32x384xf32>
    %2 = tpu.matmul %0, %1, %cst {dimension_numbers = #tpu.dot_dimension_numbers<[1], [0], [0], [1], [0, 0, 1, 1], [], []>} : vector<32x28xf32>, vector<28x384xf32>, vector<32x384xf32> -> vector<32x384xf32>
    %c0_3 = arith.constant 0 : index
    %c0_4 = arith.constant 0 : index
    %3 = vector.load %arg2[%c0_3, %c0_4] : memref<32x1xf32, #tpu.memory_space<vmem>>, vector<32x1xf32>
    %4 = vector.broadcast %3 : vector<32x1xf32> to vector<32x384xf32>
    %5 = arith.addf %2, %4 : vector<32x384xf32>
    %cst_5 = arith.constant dense<0.000000e+00> : vector<32xf32>
    %6 = vector.multi_reduction <add>, %5, %cst_5 [1] : vector<32x384xf32> to vector<32xf32>
    %7 = vector.shape_cast %6 : vector<32xf32> to vector<32x1xf32>
    %cst_6 = arith.constant 3.840000e+02 : f32
    %8 = vector.broadcast %cst_6 : f32 to vector<32x1xf32>
    %9 = arith.divf %7, %8 : vector<32x1xf32>
    %10 = vector.broadcast %9 : vector<32x1xf32> to vector<32x384xf32>
    %11 = arith.subf %5, %10 : vector<32x384xf32>
    %12 = arith.mulf %11, %11 : vector<32x384xf32>
    %cst_7 = arith.constant dense<0.000000e+00> : vector<32xf32>
    %13 = vector.multi_reduction <add>, %12, %cst_7 [1] : vector<32x384xf32> to vector<32xf32>
    %14 = vector.shape_cast %13 : vector<32xf32> to vector<32x1xf32>
    %cst_8 = arith.constant 3.840000e+02 : f32
    %15 = vector.broadcast %cst_8 : f32 to vector<32x1xf32>
    %16 = arith.divf %14, %15 : vector<32x1xf32>
    %17 = vector.broadcast %9 : vector<32x1xf32> to vector<32x384xf32>
    %18 = arith.subf %5, %17 : vector<32x384xf32>
    %cst_9 = arith.constant 9.99999974E-6 : f32
    %19 = vector.broadcast %cst_9 : f32 to vector<32x1xf32>
    %20 = arith.addf %16, %19 : vector<32x1xf32>
    %21 = math.rsqrt %20 : vector<32x1xf32>
    %22 = vector.broadcast %21 : vector<32x1xf32> to vector<32x384xf32>
    %23 = arith.mulf %18, %22 : vector<32x384xf32>
    %c0_10 = arith.constant 0 : index
    %c0_11 = arith.constant 0 : index
    %24 = vector.load %arg3[%c0_10, %c0_11] : memref<32x1xf32, #tpu.memory_space<vmem>>, vector<32x1xf32>
    %25 = vector.broadcast %24 : vector<32x1xf32> to vector<32x384xf32>
    %26 = arith.mulf %23, %25 : vector<32x384xf32>
    %c0_12 = arith.constant 0 : index
    %c0_13 = arith.constant 0 : index
    %27 = vector.load %arg4[%c0_12, %c0_13] : memref<32x1xf32, #tpu.memory_space<vmem>>, vector<32x1xf32>
    %28 = vector.broadcast %27 : vector<32x1xf32> to vector<32x384xf32>
    %29 = arith.addf %26, %28 : vector<32x384xf32>
    %c0_14 = arith.constant 0 : index
    %c0_15 = arith.constant 0 : index
    %30 = vector.load %arg5[%c0_14, %c0_15] : memref<32x384xf32, #tpu.memory_space<vmem>>, vector<32x384xf32>
    tpu.vector_store %arg5[%c0_14, %c0_15], %29 {strides = array<i32>} : memref<32x384xf32, #tpu.memory_space<vmem>>, vector<32x384xf32>,
    return
  }
}

</mosaic_0001>

<llo_original>
// kernel: overlap_patch_embed.1
$region0: #{overlap_patch_embed.1}
  #allocation0 [shape = 'u32[]', space=smem, size = 0x4, offset = 0x4, fixed_abs, tag = 'smem constant byte address 0x4 - core index']
  #allocation1 [shape = 'u32[72,128]{1,0:T(1,128)}', space=vmem, size = 0x9000, scoped, tag = 'internal scratch']
  %s0 = inlined_call_operand.vmem [shape: f32[28,384], index: 0, kind: input, shape index: {}]
  %s1 = inlined_call_operand.vmem [shape: f32[32,28], index: 1, kind: input, shape index: {}]
  %s2 = inlined_call_operand.vmem [shape: f32[32,1], index: 2, kind: input, shape index: {}]
  %s3 = inlined_call_operand.vmem [shape: f32[32,1], index: 3, kind: input, shape index: {}]
  %s4 = inlined_call_operand.vmem [shape: f32[32,1], index: 4, kind: input, shape index: {}]
  %s5 = inlined_call_operand.vmem [shape: f32[32,384], index: 5, kind: output, shape index: {}]
  %s6 = sld [smem:[#allocation0]]
  $region30: #{overlap_patch_embed.1} parent=0
    _
  %s8 = ssub.s32 1, %s6
  %s9 = scalar_select 0, %s8, %s6
  // Predicated region
  $region2: #{overlap_patch_embed.1} parent=0 // pred_check
    _
  $region3: #{overlap_patch_embed.1} parent=0 // pred_check_branch
    %11 = sbr.rel (0) target = $region5
  $region4: #{overlap_patch_embed.1} parent=0 // pred_region
    _
  $region5: #{overlap_patch_embed.1} parent=0 // pred_fallthru
    _
  // Predicated region
  $region6: #{overlap_patch_embed.1} parent=0 // pred_check
    _
  $region7: #{overlap_patch_embed.1} parent=0 // pred_check_branch
    %13 = sbr.rel (0) target = $region9
  $region8: #{overlap_patch_embed.1} parent=0 // pred_region
    _
  $region9: #{overlap_patch_embed.1} parent=0 // pred_fallthru
    _
  // Predicated region
  $region10: #{overlap_patch_embed.1} parent=0 // pred_check
    _
  $region11: #{overlap_patch_embed.1} parent=0 // pred_check_branch
    %15 = sbr.rel (0) target = $region13
  $region12: #{overlap_patch_embed.1} parent=0 // pred_region
    _
  $region13: #{overlap_patch_embed.1} parent=0 // pred_fallthru
    _
  // Predicated region
  $region14: #{overlap_patch_embed.1} parent=0 // pred_check
    _
  $region15: #{overlap_patch_embed.1} parent=0 // pred_check_branch
    %17 = sbr.rel (0) target = $region17
  $region16: #{overlap_patch_embed.1} parent=0 // pred_region
    _
  $region17: #{overlap_patch_embed.1} parent=0 // pred_fallthru
    _
  // Predicated region
  $region18: #{overlap_patch_embed.1} parent=0 // pred_check
    _
  $region19: #{overlap_patch_embed.1} parent=0 // pred_check_branch
    %19 = sbr.rel (0) target = $region21
  $region20: #{overlap_patch_embed.1} parent=0 // pred_region
    _
  $region21: #{overlap_patch_embed.1} parent=0 // pred_fallthru
    _
  %v20 = vld [vmem:[%s1] sm:$0xff]
  %v21 = vld [vmem:[%s1 + $0x8] sm:$0xff]
  %v22 = vld [vmem:[%s1 + $0x10] sm:$0xff]
  %v23 = vld [vmem:[%s1 + $0x18] sm:$0xff]
  %v24 = vld [vmem:[%s0] sm:$0xff]
  %v25 = vld [vmem:[%s0 + $0x8] sm:$0xff]
  %v26 = vld [vmem:[%s0 + $0x10] sm:$0xff]
  %v27 = vld [vmem:[%s0 + $0x18] sm:$0xff]
  %v28 = vld [vmem:[%s0 + $0x20] sm:$0xff]
  %v29 = vld [vmem:[%s0 + $0x28] sm:$0xff]
  %v30 = vld [vmem:[%s0 + $0x30] sm:$0xff]
  %v31 = vld [vmem:[%s0 + $0x38] sm:$0xff]
  %v32 = vld [vmem:[%s0 + $0x40] sm:$0xff]
  %v33 = vld [vmem:[%s0 + $0x48] sm:$0xf]
  %v34 = vld [vmem:[%s0 + $0x50] sm:$0xf]
  %v35 = vld [vmem:[%s0 + $0x58] sm:$0xf]
  %v36 = vld [vmem:[%s2] sm:$0xff]
  %v37 = vld [vmem:[%s2 + $0x8] sm:$0xff]
  %v38 = vld [vmem:[%s2 + $0x10] sm:$0xff]
  %v39 = vld [vmem:[%s2 + $0x18] sm:$0xff]
  %41 = vset.pattern.permute.xlu0 0
  %42 = vperm.xlu0 %41, %v36
  %v43 = vpop.permute.xlu0 %42
  %46 = vset.pattern.permute.xlu0 0
  %47 = vperm.xlu0 %46, %v37
  %v48 = vpop.permute.xlu0 %47
  %51 = vset.pattern.permute.xlu0 0
  %52 = vperm.xlu0 %51, %v38
  %v53 = vpop.permute.xlu0 %52
  %56 = vset.pattern.permute.xlu0 0
  %57 = vperm.xlu0 %56, %v39
  %v58 = vpop.permute.xlu0 %57
  %vm60 = vcmask 228352
  %v62 = vsel %vm60, %v20, 0
  %v65 = vsel %vm60, %v21, 0
  %v68 = vsel %vm60, %v22, 0
  %v71 = vsel %vm60, %v23, 0
  %vm73 = vcmask 1043456
  %v75 = vsel %vm73, %v33, 0
  %v78 = vsel %vm73, %v34, 0
  %v81 = vsel %vm73, %v35, 0
  %83 = vmatpush.msra.mxu0 0.0
  %84 = vmatpush.msra.mxu0 0.0
  %85 = vmatpush.msra.mxu0 0.0
  %86 = vmatpush.msra.mxu0 0.0
  %87 = vmatpush.msra.mxu0 0.0
  %88 = vmatpush.msra.mxu0 0.0
  %89 = vmatpush.msra.mxu0 0.0
  %90 = vmatpush.msra.mxu0 0.0
  %91 = vmatpush.msra.mxu0 0.0
  %92 = vmatpush.msra.mxu0 0.0
  %93 = vmatpush.msra.mxu0 0.0
  %94 = vmatpush.msra.mxu0 0.0
  %95 = vmatpush.msra.mxu0 %v75
  %96 = vmatpush.msra.mxu0 %v30
  %97 = vmatpush.msra.mxu0 %v27
  %98 = vmatpush.msra.mxu0 %v24
  %99 = vmatmul.f32.gmra.mxu0 %v62
  %v100 = vpop.f32.mrf.mxu0
  %v101 = vadd.f32 %v43, %v100
  %102 = vmatmul.f32.gmra.mxu0 %v65
  %v103 = vpop.f32.mrf.mxu0
  %v104 = vadd.f32 %v48, %v103
  %105 = vmatmul.f32.gmra.mxu0 %v68
  %v106 = vpop.f32.mrf.mxu0
  %v107 = vadd.f32 %v53, %v106
  %108 = vmatmul.f32.gmra.mxu0 %v71
  %v109 = vpop.f32.mrf.mxu0
  %v110 = vadd.f32 %v58, %v109
  %111 = vdwg.mxu0
  %112 = vmatpush.msra.mxu0 0.0
  %113 = vmatpush.msra.mxu0 0.0
  %114 = vmatpush.msra.mxu0 0.0
  %115 = vmatpush.msra.mxu0 0.0
  %116 = vmatpush.msra.mxu0 0.0
  %117 = vmatpush.msra.mxu0 0.0
  %118 = vmatpush.msra.mxu0 0.0
  %119 = vmatpush.msra.mxu0 0.0
  %120 = vmatpush.msra.mxu0 0.0
  %121 = vmatpush.msra.mxu0 0.0
  %122 = vmatpush.msra.mxu0 0.0
  %123 = vmatpush.msra.mxu0 0.0
  %124 = vmatpush.msra.mxu0 %v78
  %125 = vmatpush.msra.mxu0 %v31
  %126 = vmatpush.msra.mxu0 %v28
  %127 = vmatpush.msra.mxu0 %v25
  %128 = vmatmul.f32.gmra.mxu0 %v62
  %v129 = vpop.f32.mrf.mxu0
  %v130 = vadd.f32 %v43, %v129
  %131 = vmatmul.f32.gmra.mxu0 %v65
  %v132 = vpop.f32.mrf.mxu0
  %v133 = vadd.f32 %v48, %v132
  %134 = vmatmul.f32.gmra.mxu0 %v68
  %v135 = vpop.f32.mrf.mxu0
  %v136 = vadd.f32 %v53, %v135
  %137 = vmatmul.f32.gmra.mxu0 %v71
  %v138 = vpop.f32.mrf.mxu0
  %v139 = vadd.f32 %v58, %v138
  %140 = vdwg.mxu0
  %141 = vmatpush.msra.mxu0 0.0
  %142 = vmatpush.msra.mxu0 0.0
  %143 = vmatpush.msra.mxu0 0.0
  %144 = vmatpush.msra.mxu0 0.0
  %145 = vmatpush.msra.mxu0 0.0
  %146 = vmatpush.msra.mxu0 0.0
  %147 = vmatpush.msra.mxu0 0.0
  %148 = vmatpush.msra.mxu0 0.0
  %149 = vmatpush.msra.mxu0 0.0
  %150 = vmatpush.msra.mxu0 0.0
  %151 = vmatpush.msra.mxu0 0.0
  %152 = vmatpush.msra.mxu0 0.0
  %153 = vmatpush.msra.mxu0 %v81
  %154 = vmatpush.msra.mxu0 %v32
  %155 = vmatpush.msra.mxu0 %v29
  %156 = vmatpush.msra.mxu0 %v26
  %157 = vmatmul.f32.gmra.mxu0 %v62
  %v158 = vpop.f32.mrf.mxu0
  %v159 = vadd.f32 %v43, %v158
  %160 = vmatmul.f32.gmra.mxu0 %v65
  %v161 = vpop.f32.mrf.mxu0
  %v162 = vadd.f32 %v48, %v161
  %163 = vmatmul.f32.gmra.mxu0 %v68
  %v164 = vpop.f32.mrf.mxu0
  %v165 = vadd.f32 %v53, %v164
  %166 = vmatmul.f32.gmra.mxu0 %v71
  %v167 = vpop.f32.mrf.mxu0
  %v168 = vadd.f32 %v58, %v167
  %169 = vdwg.mxu0
  %v170 = vadd.f32 %v101, %v130
  %v171 = vadd.f32 %v170, %v159
  %172 = vadd.xlane.f32.xlu0 %v171
  %v173 = vpop.xlane.xlu0 %172
  %v174 = vadd.f32 %v104, %v133
  %v175 = vadd.f32 %v174, %v162
  %176 = vadd.xlane.f32.xlu0 %v175
  %v177 = vpop.xlane.xlu0 %176
  %v178 = vadd.f32 %v107, %v136
  %v179 = vadd.f32 %v178, %v165
  %180 = vadd.xlane.f32.xlu0 %v179
  %v181 = vpop.xlane.xlu0 %180
  %v182 = vadd.f32 %v110, %v139
  %v183 = vadd.f32 %v182, %v168
  %184 = vadd.xlane.f32.xlu0 %v183
  %v185 = vpop.xlane.xlu0 %184
  %v186 = vrcp.pop 384.0
  %v187 = vmul.f32 384.0, %v186
  %v188 = vsub.f32 1.0, %v187
  %v189 = vmul.f32 %v186, %v188
  %v190 = vadd.f32 %v186, %v189
  %vm191 = vweird.f32 %v186
  %v192 = vsel %vm191, %v186, %v190
  %v193 = vmul.f32 %v173, %v192
  %v194 = vmul.f32 %v177, %v192
  %v195 = vmul.f32 %v181, %v192
  %v196 = vmul.f32 %v185, %v192
  %v197 = vsub.f32 %v101, %v193
  %v198 = vsub.f32 %v130, %v193
  %v199 = vsub.f32 %v159, %v193
  %v200 = vsub.f32 %v104, %v194
  %v201 = vsub.f32 %v133, %v194
  %v202 = vsub.f32 %v162, %v194
  %v203 = vsub.f32 %v107, %v195
  %v204 = vsub.f32 %v136, %v195
  %v205 = vsub.f32 %v165, %v195
  %v206 = vsub.f32 %v110, %v196
  %v207 = vsub.f32 %v139, %v196
  %v208 = vsub.f32 %v168, %v196
  %v209 = vmul.f32 %v197, %v197
  %v210 = vmul.f32 %v198, %v198
  %v211 = vmul.f32 %v199, %v199
  %v212 = vmul.f32 %v200, %v200
  %v213 = vmul.f32 %v201, %v201
  %v214 = vmul.f32 %v202, %v202
  %v215 = vmul.f32 %v203, %v203
  %v216 = vmul.f32 %v204, %v204
  %v217 = vmul.f32 %v205, %v205
  %v218 = vmul.f32 %v206, %v206
  %v219 = vmul.f32 %v207, %v207
  %v220 = vmul.f32 %v208, %v208
  %v221 = vadd.f32 %v209, %v210
  %v222 = vadd.f32 %v221, %v211
  %223 = vadd.xlane.f32.xlu0 %v222
  %v224 = vpop.xlane.xlu0 %223
  %v225 = vadd.f32 %v212, %v213
  %v226 = vadd.f32 %v225, %v214
  %227 = vadd.xlane.f32.xlu0 %v226
  %v228 = vpop.xlane.xlu0 %227
  %v229 = vadd.f32 %v215, %v216
  %v230 = vadd.f32 %v229, %v217
  %231 = vadd.xlane.f32.xlu0 %v230
  %v232 = vpop.xlane.xlu0 %231
  %v233 = vadd.f32 %v218, %v219
  %v234 = vadd.f32 %v233, %v220
  %235 = vadd.xlane.f32.xlu0 %v234
  %v236 = vpop.xlane.xlu0 %235
  %v237 = vmul.f32 %v224, %v192
  %v238 = vmul.f32 %v228, %v192
  %v239 = vmul.f32 %v232, %v192
  %v240 = vmul.f32 %v236, %v192
  %v241 = vadd.f32 %v237, 1e-05
  %v242 = vadd.f32 %v238, 1e-05
  %v243 = vadd.f32 %v239, 1e-05
  %v244 = vadd.f32 %v240, 1e-05
  %v245 = vrsqrt.pop %v241
  %v246 = vmul.f32 %v245, %v241
  %v247 = vmul.f32 %v246, %v245
  %v248 = vmul.f32 0.5, %v247
  %v249 = vsub.f32 1.5, %v248
  %v250 = vmul.f32 %v245, %v249
  %vm251 = vweird.f32 %v241
  %vm252 = vweird.f32 %v245
  %vm253 = vmor %vm251, %vm252
  %v254 = vsel %vm253, %v245, %v250
  %v255 = vrsqrt.pop %v242
  %v256 = vmul.f32 %v255, %v242
  %v257 = vmul.f32 %v256, %v255
  %v258 = vmul.f32 0.5, %v257
  %v259 = vsub.f32 1.5, %v258
  %v260 = vmul.f32 %v255, %v259
  %vm261 = vweird.f32 %v242
  %vm262 = vweird.f32 %v255
  %vm263 = vmor %vm261, %vm262
  %v264 = vsel %vm263, %v255, %v260
  %v265 = vrsqrt.pop %v243
  %v266 = vmul.f32 %v265, %v243
  %v267 = vmul.f32 %v266, %v265
  %v268 = vmul.f32 0.5, %v267
  %v269 = vsub.f32 1.5, %v268
  %v270 = vmul.f32 %v265, %v269
  %vm271 = vweird.f32 %v243
  %vm272 = vweird.f32 %v265
  %vm273 = vmor %vm271, %vm272
  %v274 = vsel %vm273, %v265, %v270
  %v275 = vrsqrt.pop %v244
  %v276 = vmul.f32 %v275, %v244
  %v277 = vmul.f32 %v276, %v275
  %v278 = vmul.f32 0.5, %v277
  %v279 = vsub.f32 1.5, %v278
  %v280 = vmul.f32 %v275, %v279
  %vm281 = vweird.f32 %v244
  %vm282 = vweird.f32 %v275
  %vm283 = vmor %vm281, %vm282
  %v284 = vsel %vm283, %v275, %v280
  %v285 = vmul.f32 %v197, %v254
  %v286 = vmul.f32 %v198, %v254
  %v287 = vmul.f32 %v199, %v254
  %v288 = vmul.f32 %v200, %v264
  %v289 = vmul.f32 %v201, %v264
  %v290 = vmul.f32 %v202, %v264
  %v291 = vmul.f32 %v203, %v274
  %v292 = vmul.f32 %v204, %v274
  %v293 = vmul.f32 %v205, %v274
  %v294 = vmul.f32 %v206, %v284
  %v295 = vmul.f32 %v207, %v284
  %v296 = vmul.f32 %v208, %v284
  %v297 = vld [vmem:[%s3] sm:$0xff]
  %v298 = vld [vmem:[%s3 + $0x8] sm:$0xff]
  %v299 = vld [vmem:[%s3 + $0x10] sm:$0xff]
  %v300 = vld [vmem:[%s3 + $0x18] sm:$0xff]
  %302 = vset.pattern.permute.xlu0 0
  %303 = vperm.xlu0 %302, %v297
  %v304 = vpop.permute.xlu0 %303
  %307 = vset.pattern.permute.xlu0 0
  %308 = vperm.xlu0 %307, %v298
  %v309 = vpop.permute.xlu0 %308
  %312 = vset.pattern.permute.xlu0 0
  %313 = vperm.xlu0 %312, %v299
  %v314 = vpop.permute.xlu0 %313
  %317 = vset.pattern.permute.xlu0 0
  %318 = vperm.xlu0 %317, %v300
  %v319 = vpop.permute.xlu0 %318
  %v321 = vmul.f32 %v285, %v304
  %v322 = vmul.f32 %v286, %v304
  %v323 = vmul.f32 %v287, %v304
  %v324 = vmul.f32 %v288, %v309
  %v325 = vmul.f32 %v289, %v309
  %v326 = vmul.f32 %v290, %v309
  %v327 = vmul.f32 %v291, %v314
  %v328 = vmul.f32 %v292, %v314
  %v329 = vmul.f32 %v293, %v314
  %v330 = vmul.f32 %v294, %v319
  %v331 = vmul.f32 %v295, %v319
  %v332 = vmul.f32 %v296, %v319
  %v333 = vld [vmem:[%s4] sm:$0xff]
  %v334 = vld [vmem:[%s4 + $0x8] sm:$0xff]
  %v335 = vld [vmem:[%s4 + $0x10] sm:$0xff]
  %v336 = vld [vmem:[%s4 + $0x18] sm:$0xff]
  %338 = vset.pattern.permute.xlu0 0
  %339 = vperm.xlu0 %338, %v333
  %v340 = vpop.permute.xlu0 %339
  %343 = vset.pattern.permute.xlu0 0
  %344 = vperm.xlu0 %343, %v334
  %v345 = vpop.permute.xlu0 %344
  %348 = vset.pattern.permute.xlu0 0
  %349 = vperm.xlu0 %348, %v335
  %v350 = vpop.permute.xlu0 %349
  %353 = vset.pattern.permute.xlu0 0
  %354 = vperm.xlu0 %353, %v336
  %v355 = vpop.permute.xlu0 %354
  %v357 = vadd.f32 %v321, %v340
  %v358 = vadd.f32 %v322, %v340
  %v359 = vadd.f32 %v323, %v340
  %v360 = vadd.f32 %v324, %v345
  %v361 = vadd.f32 %v325, %v345
  %v362 = vadd.f32 %v326, %v345
  %v363 = vadd.f32 %v327, %v350
  %v364 = vadd.f32 %v328, %v350
  %v365 = vadd.f32 %v329, %v350
  %v366 = vadd.f32 %v330, %v355
  %v367 = vadd.f32 %v331, %v355
  %v368 = vadd.f32 %v332, %v355
  %369 = vst [vmem:[%s5] sm:$0xff] %v357
  %370 = vst [vmem:[%s5 + $0x8] sm:$0xff] %v358
  %371 = vst [vmem:[%s5 + $0x10] sm:$0xff] %v359
  %372 = vst [vmem:[%s5 + $0x18] sm:$0xff] %v360
  %373 = vst [vmem:[%s5 + $0x20] sm:$0xff] %v361
  %374 = vst [vmem:[%s5 + $0x28] sm:$0xff] %v362
  %375 = vst [vmem:[%s5 + $0x30] sm:$0xff] %v363
  %376 = vst [vmem:[%s5 + $0x38] sm:$0xff] %v364
  %377 = vst [vmem:[%s5 + $0x40] sm:$0xff] %v365
  %378 = vst [vmem:[%s5 + $0x48] sm:$0xff] %v366
  %379 = vst [vmem:[%s5 + $0x50] sm:$0xff] %v367
  %380 = vst [vmem:[%s5 + $0x58] sm:$0xff] %v368
  // Predicated region
  $region22: #{overlap_patch_embed.1} parent=0 // pred_check
    _
  $region23: #{overlap_patch_embed.1} parent=0 // pred_check_branch
    %382 = sbr.rel (0) target = $region25
  $region24: #{overlap_patch_embed.1} parent=0 // pred_region
    _
  $region25: #{overlap_patch_embed.1} parent=0 // pred_fallthru
    _
  // Predicated region
  $region26: #{overlap_patch_embed.1} parent=0 // pred_check
    _
  $region27: #{overlap_patch_embed.1} parent=0 // pred_check_branch
    %384 = sbr.rel (0) target = $region29
  $region28: #{overlap_patch_embed.1} parent=0 // pred_region
    _
  $region29: #{overlap_patch_embed.1} parent=0 // pred_fallthru
    _

</llo_original>
